<compile_context>
chip_gen: v7x
topology: tpu7x:2x2x1
jax: 0.10.0
libtpu: 0.0.40
codegen_flags: <defaults>
</compile_context>

<pallas_src>
import functools
import math

import jax
import jax.numpy as jnp
from jax import lax
from jax.experimental import pallas as pl
from jax.experimental.pallas import tpu as pltpu


def _round_up(v: int, m: int) -> int:
    return (v + m - 1) // m * m


# Sentinel for padded pixels / padded bins: (1e8 * k)^2 ~ 9e11, exp(-9e11) == 0
# exactly in f32, so padding contributes nothing to g or to the row total.
_SENTINEL = 1e8


def _soft_hist_kernel(centers_ref, x_ref, o_ref, g_ref, *, k_scale):
    # centers_ref: (bins_pad, 1) f32 VMEM (constant block index -> no re-DMA)
    # x_ref / o_ref: (1, n_chunks, chunk) VMEM tiles (one batch row per step)
    # g_ref: (n_chunks, chunk) f32 VMEM scratch (unnormalized row)
    n_chunks = x_ref.shape[1]

    # Pre-scaled centers, hoisted once per grid step.
    ck = centers_ref[...].astype(jnp.float32) * k_scale            # (bins_pad, 1)

    def body(t, total):
        xk = x_ref[0, pl.ds(t, 1), :].astype(jnp.float32) * k_scale  # (1, chunk)
        z = xk - ck                                                   # (bins_pad, chunk)
        # exp(-((x-c)^2 * 0.5 / sigma^2)); the constant coefficient cancels in
        # the row normalization and is omitted.
        g = jnp.sum(jnp.exp(-(z * z)), axis=0, keepdims=True)        # (1, chunk)
        g_ref[pl.ds(t, 1), :] = g
        return total + jnp.sum(g, axis=1, keepdims=True)             # (1, 1)

    total = lax.fori_loop(0, n_chunks, body, jnp.zeros((1, 1), jnp.float32))

    # Single normalized store of the whole row (one cast, no output RMW).
    inv_total = 1.0 / total                                          # exact divide
    o_ref[...] = (g_ref[...] * inv_total).reshape(o_ref.shape).astype(o_ref.dtype)


def soft_histogram(x, centers, *, sigma, out_hw):
    """x: (bn, c); centers: (bins,); returns (bn, out_hw[0], out_hw[1]).

    Note: the delta/(sigma*sqrt(2*pi)) coefficient of the reference cancels
    exactly in the per-row normalization and is therefore not needed here.
    """
    bn, c = x.shape
    bins = centers.shape[0]
    assert out_hw[0] * out_hw[1] == c, "out_hw must match the pixel count"

    # --- chunking: lane-dense (multiple of 128), capped at 2048 -------------
    if c <= 2048:
        chunk = _round_up(c, 128)
        c_pad = chunk
    else:
        chunk = 2048
        c_pad = _round_up(c, chunk)
    n_chunks = c_pad // chunk

    xp = x
    if c_pad != c:
        xp = jnp.pad(x, ((0, 0), (0, c_pad - c)), constant_values=_SENTINEL)
    x3 = xp.reshape(bn, n_chunks, chunk)            # sublane-dense row layout

    # --- pad bins to a multiple of 8 sublanes -------------------------------
    bins_pad = _round_up(bins, 8)
    cen = centers.astype(jnp.float32)
    if bins_pad != bins:
        cen = jnp.pad(cen, (0, bins_pad - bins), constant_values=_SENTINEL)
    centers2 = cen.reshape(bins_pad, 1)

    k_scale = math.sqrt(0.5) / float(sigma)

    kernel = functools.partial(_soft_hist_kernel, k_scale=k_scale)

    # --- right-sized VMEM budget (<= 32 MiB) --------------------------------
    row_bytes = _round_up(n_chunks, 8) * chunk * 4          # one row buffer
    centers_bytes = bins_pad * 128 * 4                      # lane-padded centers
    temp_bytes = 4 * bins_pad * chunk * 4                   # a few (bins, chunk) temps
    vmem_bytes = (2 * 2 * row_bytes        # in + out, double-buffered
                  + row_bytes              # f32 scratch
                  + 2 * centers_bytes
                  + temp_bytes
                  + (4 << 20))             # Mosaic internal headroom
    vmem_limit = int(max(16 << 20, min(32 << 20, vmem_bytes)))

    out = pl.pallas_call(
        kernel,
        out_shape=jax.ShapeDtypeStruct((bn, n_chunks, chunk), x.dtype),
        grid=(bn,),
        in_specs=[
            # Full (bins_pad, 1) centers; constant block index -> loaded once.
            pl.BlockSpec((bins_pad, 1), lambda b: (0, 0)),
            # One full (sublane-dense) pixel row per grid step.
            pl.BlockSpec((1, n_chunks, chunk), lambda b: (b, 0, 0)),
        ],
        out_specs=pl.BlockSpec((1, n_chunks, chunk), lambda b: (b, 0, 0)),
        scratch_shapes=[pltpu.VMEM((n_chunks, chunk), jnp.float32)],
        compiler_params=pltpu.CompilerParams(
            dimension_semantics=("parallel",),
            vmem_limit_bytes=vmem_limit,
        ),
    )(centers2, x3)

    out = out.reshape(bn, c_pad)
    if c_pad != c:
        out = out[:, :c]
    return out.reshape(bn, out_hw[0], out_hw[1])


if __name__ == "__main__":
    # Module hyper-parameters (SoftHistogram defaults).
    bins, vmin, vmax, sigma = 255, 0.0, 255.0, 3 * 25
    delta = (vmax - vmin) / float(bins)
    centers = vmin + delta * (jnp.arange(bins, dtype=jnp.float32) + 0.5)

    # Small deterministic input consistent with the forward: x is (bn, H*W) and
    # the result is viewed as (bn, H, W).  The real module uses 640x480; we use
    # a 16x16 image here so the test stays small.
    bn, H, W = 2, 16, 16
    key = jax.random.PRNGKey(0)
    x = jax.random.uniform(key, (bn, H * W), dtype=jnp.float32,
                           minval=vmin, maxval=vmax)

    out = soft_histogram(x, centers, sigma=sigma, out_hw=(H, W))
    out = jax.block_until_ready(out)

    # Pure-JAX reference of the PyTorch forward (including the coefficient,
    # which cancels in the normalization).
    d = x[:, None, :] - centers[:, None]                             # (bn, bins, c)
    g = jnp.exp(-0.5 * (d / sigma) ** 2) / (sigma * jnp.sqrt(2.0 * jnp.pi)) * delta
    g = g.sum(axis=1)                                                # (bn, c)
    g = g / g.sum(axis=1, keepdims=True)
    ref = g.reshape(bn, H, W)

    assert out.shape == (bn, H, W)
    assert jnp.allclose(out, ref, rtol=1e-5, atol=1e-7), "mismatch vs reference"
    print("KERNEL_OK")
</pallas_src>

<mosaic_0001>
module attributes {stable_mosaic.version = 11 : i64} {
  func.func @_soft_hist_kernel(%arg0: i32, %arg1: memref<256x1xf32, #tpu.memory_space<vmem>>, %arg2: memref<1x1x256xf32, #tpu.memory_space<vmem>>, %arg3: memref<1x1x256xf32, #tpu.memory_space<vmem>>, %arg4: memref<1x256xf32, #tpu.memory_space<vmem>>) attributes {dimension_semantics = [#tpu.dimension_semantics<parallel>], iteration_bounds = array<i64: 2>, scalar_prefetch = 0 : i64, scratch_operands = 1 : i64, tpu.core_type = #tpu.core_type<tc>, window_params = [{pipeline_mode = #tpu.pipeline_mode<synchronous>, transform_indices = @transform_0, window_bounds = array<i64: 256, 1>}, {transform_indices = @transform_1, window_bounds = array<i64: 1, 1, 256>}, {transform_indices = @transform_2, window_bounds = array<i64: 1, 1, 256>}]} {
    %c0 = arith.constant 0 : index
    %c0_0 = arith.constant 0 : index
    %0 = vector.load %arg1[%c0, %c0_0] : memref<256x1xf32, #tpu.memory_space<vmem>>, vector<256x1xf32>
    %cst = arith.constant 9.428090e-03 : f32
    %1 = vector.broadcast %cst : f32 to vector<256x1xf32>
    %2 = arith.mulf %0, %1 : vector<256x1xf32>
    %cst_1 = arith.constant 0.000000e+00 : f32
    %3 = vector.broadcast %cst_1 : f32 to vector<1x1xf32>
    %c0_i32 = arith.constant 0 : i32
    %c0_2 = arith.constant 0 : index
    %4 = arith.index_cast %c0_i32 : i32 to index
    %c0_3 = arith.constant 0 : index
    %5 = vector.load %arg2[%c0_2, %4, %c0_3] : memref<1x1x256xf32, #tpu.memory_space<vmem>>, vector<1x1x256xf32>
    %6 = vector.shape_cast %5 : vector<1x1x256xf32> to vector<1x256xf32>
    %cst_4 = arith.constant 9.428090e-03 : f32
    %7 = vector.broadcast %cst_4 : f32 to vector<1x256xf32>
    %8 = arith.mulf %6, %7 : vector<1x256xf32>
    %9 = vector.broadcast %8 : vector<1x256xf32> to vector<256x256xf32>
    %10 = vector.broadcast %2 : vector<256x1xf32> to vector<256x256xf32>
    %11 = arith.subf %9, %10 : vector<256x256xf32>
    %12 = arith.mulf %11, %11 : vector<256x256xf32>
    %cst_5 = arith.constant 0.000000e+00 : f32
    %13 = vector.broadcast %cst_5 : f32 to vector<256x256xf32>
    %14 = arith.subf %13, %12 : vector<256x256xf32>
    %15 = math.exp %14 : vector<256x256xf32>
    %cst_6 = arith.constant dense<0.000000e+00> : vector<256xf32>
    %16 = vector.multi_reduction <add>, %15, %cst_6 [0] : vector<256x256xf32> to vector<256xf32>
    %17 = vector.shape_cast %16 : vector<256xf32> to vector<1x256xf32>
    %18 = arith.index_cast %c0_i32 : i32 to index
    %c0_7 = arith.constant 0 : index
    %19 = vector.load %arg4[%18, %c0_7] : memref<1x256xf32, #tpu.memory_space<vmem>>, vector<1x256xf32>
    tpu.vector_store %arg4[%18, %c0_7], %17 {strides = array<i32>} : memref<1x256xf32, #tpu.memory_space<vmem>>, vector<1x256xf32>,
    %cst_8 = arith.constant dense<0.000000e+00> : vector<1xf32>
    %20 = vector.multi_reduction <add>, %17, %cst_8 [1] : vector<1x256xf32> to vector<1xf32>
    %21 = vector.shape_cast %20 : vector<1xf32> to vector<1x1xf32>
    %22 = arith.addf %3, %21 : vector<1x1xf32>
    %c1_i32 = arith.constant 1 : i32
    %cst_9 = arith.constant 1.000000e+00 : f32
    %23 = vector.broadcast %cst_9 : f32 to vector<1x1xf32>
    %24 = arith.divf %23, %22 : vector<1x1xf32>
    %c0_10 = arith.constant 0 : index
    %c0_11 = arith.constant 0 : index
    %25 = vector.load %arg4[%c0_10, %c0_11] : memref<1x256xf32, #tpu.memory_space<vmem>>, vector<1x256xf32>
    %26 = vector.broadcast %24 : vector<1x1xf32> to vector<1x256xf32>
    %27 = arith.mulf %25, %26 : vector<1x256xf32>
    %28 = vector.shape_cast %27 : vector<1x256xf32> to vector<1x1x256xf32>
    %c0_12 = arith.constant 0 : index
    %c0_13 = arith.constant 0 : index
    %c0_14 = arith.constant 0 : index
    %29 = vector.load %arg3[%c0_12, %c0_13, %c0_14] : memref<1x1x256xf32, #tpu.memory_space<vmem>>, vector<1x1x256xf32>
    tpu.vector_store %arg3[%c0_12, %c0_13, %c0_14], %28 {strides = array<i32>} : memref<1x1x256xf32, #tpu.memory_space<vmem>>, vector<1x1x256xf32>,
    return
  }
  func.func @transform_0(%arg0: i32) -> (i32, i32) {
    %c0_i32 = arith.constant 0 : i32
    %c0_i32_0 = arith.constant 0 : i32
    %c0_i32_1 = arith.constant 0 : i32
    return %c0_i32, %c0_i32_0 : i32, i32
  }
  func.func @transform_1(%arg0: i32) -> (i32, i32, i32) {
    %c0_i32 = arith.constant 0 : i32
    %c0_i32_0 = arith.constant 0 : i32
    %c0_i32_1 = arith.constant 0 : i32
    return %arg0, %c0_i32, %c0_i32_0 : i32, i32, i32
  }
  func.func @transform_2(%arg0: i32) -> (i32, i32, i32) {
    %c0_i32 = arith.constant 0 : i32
    %c0_i32_0 = arith.constant 0 : i32
    %c0_i32_1 = arith.constant 0 : i32
    return %arg0, %c0_i32, %c0_i32_0 : i32, i32, i32
  }
}

</mosaic_0001>

<llo_original>
// kernel: tpu_custom_call.1
$region0: #{tpu_custom_call.1}
  #allocation0 [shape = 'u32[]', space=smem, size = 0x4, offset = 0x4, fixed_abs, tag = 'smem constant byte address 0x4 - core index']
  #allocation1 [shape = 'u32[144,128]{1,0:T(1,128)}', space=vmem, size = 0x12000, scoped, tag = 'internal scratch']
  #allocation2 [shape = 'f32[1,256]{1,0:T(1,128)}', space=vmem, size = 0x400, scoped, tag = 'scratch operand']
  %s0 = inlined_call_operand.vmem [shape: f32[256,1], index: 0, kind: input, shape index: {}]
  %s1 = inlined_call_operand.vmem [shape: f32[2,1,256], index: 1, kind: input, shape index: {}]
  %s2 = inlined_call_operand.hbm [shape: f32[2,1,256], index: 2, kind: output, shape index: {}]
  %s3 = sld [smem:[#allocation0]]
  $region41: #{tpu_custom_call.1} parent=0
    _
  %s5 = ssub.s32 1, %s3
  %s6 = scalar_select 0, %s5, %s3
  $region1: #{tpu_custom_call.1} parent=0
    #allocation3 [shape = 'u8[2048]{0}', space=vmem, size = 0x800, scoped, tag = 'output window, operand 0']
    #allocation4 [shape = 's32[2]{0}', space=sflag, size = 0x8, scoped, tag = 'scoped memory for tpu_custom_call.1']
    %7 = vsyncpa [#allocation4], 0
    %s8 = scalar_lea.sflag [#allocation4], 1
    %9 = vsyncpa %s8, 0
    loop: start=0, step=1, limit=4
    $region2: #{tpu_custom_call.1} parent=1 // loop_pre_header
      _
    $region3: #{tpu_custom_call.1} parent=1 // loop_header
      %s11 = sphi 0, %s15
      %p12 = scmp.ge.s32.totalorder %s11, 4
      %s19 = sphi 0, %s19
      %s21 = sphi 0, %s19
      %s22 = sphi 0, %s21
      %s36 = sphi 0, %s22
      %s42 = sphi 0, %s44
      %s45 = sphi 0, %s42
      %s46 = sphi 0, %s45
      %s62 = sphi 0, %s46
      %s68 = sphi 0, %s70
      %s71 = sphi 0, %s68
      %s72 = sphi 0, %s71
      %s88 = sphi 0, %s72
    $region4: #{tpu_custom_call.1} parent=1 // loop_header_branch
      %14 = sbr.rel (%p12) target = $region8
    $region5: #{tpu_custom_call.1} parent=1 // loop_body
      %s16 = ssub.s32 %s11, 1
      %s17 = ssub.s32 %s11, 2
      %s18 = sadd.s32 %s11, 1
      %s20 = sadd.s32 %s19, 1
      %p23 = scmp.eq.s32.totalorder %s11, 1
      %p24 = scmp.ne.s32.totalorder %s19, %s21
      %p25 = scmp.eq.s32.totalorder %s11, 0
      %p26 = por %p24, %p25
      %p27 = scmp.ne.s32.totalorder %s19, %s21
      %p28 = scmp.eq.s32.totalorder %s16, 1
      %p29 = por %p27, %p28
      %p30 = scmp.ne.s32.totalorder %s21, %s22
      %p31 = scmp.eq.s32.totalorder %s16, 0
      %p32 = por %p30, %p31
      %p33 = scmp.ne.s32.totalorder %s21, %s22
      %p34 = scmp.eq.s32.totalorder %s17, 1
      %p35 = por %p33, %p34
      %p37 = scmp.ne.s32.totalorder %s22, %s36
      %p38 = scmp.eq.s32.totalorder %s17, 0
      %p39 = por %p37, %p38
      %s40 = ssub.s32 %s11, %s18
      %p41 = scmp.eq.s32.totalorder %s40, 0
      %s43 = sadd.s32 %s42, 1
      %s44 = scalar_select %p41, %s42, %s43
      %p47 = pneg %p41
      %p48 = scmp.eq.s32.totalorder %s11, 1
      %p49 = por %p47, %p48
      %p50 = scmp.ne.s32.totalorder %s42, %s45
      %p51 = scmp.eq.s32.totalorder %s11, 0
      %p52 = por %p50, %p51
      %p53 = scmp.ne.s32.totalorder %s42, %s45
      %p54 = scmp.eq.s32.totalorder %s16, 1
      %p55 = por %p53, %p54
      %p56 = scmp.ne.s32.totalorder %s45, %s46
      %p57 = scmp.eq.s32.totalorder %s16, 0
      %p58 = por %p56, %p57
      %p59 = scmp.ne.s32.totalorder %s45, %s46
      %p60 = scmp.eq.s32.totalorder %s17, 1
      %p61 = por %p59, %p60
      %p63 = scmp.ne.s32.totalorder %s46, %s62
      %p64 = scmp.eq.s32.totalorder %s17, 0
      %p65 = por %p63, %p64
      %s66 = ssub.s32 %s11, %s18
      %p67 = scmp.eq.s32.totalorder %s66, 0
      %s69 = sadd.s32 %s68, 1
      %s70 = scalar_select %p67, %s68, %s69
      %p73 = pneg %p67
      %p74 = scmp.eq.s32.totalorder %s11, 1
      %p75 = por %p73, %p74
      %p76 = scmp.ne.s32.totalorder %s68, %s71
      %p77 = scmp.eq.s32.totalorder %s11, 0
      %p78 = por %p76, %p77
      %p79 = scmp.ne.s32.totalorder %s68, %s71
      %p80 = scmp.eq.s32.totalorder %s16, 1
      %p81 = por %p79, %p80
      %p82 = scmp.ne.s32.totalorder %s71, %s72
      %p83 = scmp.eq.s32.totalorder %s16, 0
      %p84 = por %p82, %p83
      %p85 = scmp.ne.s32.totalorder %s71, %s72
      %p86 = scmp.eq.s32.totalorder %s17, 1
      %p87 = por %p85, %p86
      %p89 = scmp.ne.s32.totalorder %s72, %s88
      %p90 = scmp.eq.s32.totalorder %s17, 0
      %p91 = por %p89, %p90
      %p92 = scmp.le.s32.totalorder 1, %s11
      %p93 = scmp.lt.s32.totalorder %s11, 3
      %p94 = pnand %p92, %p93
      %p95 = pneg %p94
      // Predicated region
      $region9: #{tpu_custom_call.1} parent=5 // pred_check
        _
      $region10: #{tpu_custom_call.1} parent=5 // pred_check_branch
        %97 = sbr.rel (%p94) target = $region12
      $region11: #{tpu_custom_call.1} parent=5 // pred_region
        %s98 = ssub.s32 %s11, 1
        // Predicated region
        $region13: #{tpu_custom_call.1} parent=11 // pred_check
          %p99 = pneg %p32
        $region14: #{tpu_custom_call.1} parent=11 // pred_check_branch
          %101 = sbr.rel (%p99) target = $region16
        $region15: #{tpu_custom_call.1} parent=11 // pred_region
          _
        $region16: #{tpu_custom_call.1} parent=11 // pred_fallthru
          _
      $region12: #{tpu_custom_call.1} parent=5 // pred_fallthru
        _
      %p102 = scmp.lt.s32.totalorder %s11, 2
      // Predicated region
      $region17: #{tpu_custom_call.1} parent=5 // pred_check
        %p103 = pneg %p102
      $region18: #{tpu_custom_call.1} parent=5 // pred_check_branch
        %105 = sbr.rel (%p103) target = $region20
      $region19: #{tpu_custom_call.1} parent=5 // pred_region
        // Predicated region
        $region21: #{tpu_custom_call.1} parent=19 // pred_check
          %p106 = pneg %p52
        $region22: #{tpu_custom_call.1} parent=19 // pred_check_branch
          %108 = sbr.rel (%p106) target = $region24
        $region23: #{tpu_custom_call.1} parent=19 // pred_region
          %p109 = scmp.lt.s32.totalorder %s11, 1
          %s110 = scalar_select %p109, %s11, 1
          %s111 = smul.addr %s110, 2
          %s112 = scalar_lea.vmem %s1, %s111
        $region24: #{tpu_custom_call.1} parent=19 // pred_fallthru
          _
      $region20: #{tpu_custom_call.1} parent=5 // pred_fallthru
        _
      %p113 = scmp.le.s32.totalorder 1, %s11
      %p114 = scmp.lt.s32.totalorder %s11, 3
      %p115 = pnand %p113, %p114
      %p116 = pneg %p115
      // Predicated region
      $region25: #{tpu_custom_call.1} parent=5 // pred_check
        _
      $region26: #{tpu_custom_call.1} parent=5 // pred_check_branch
        %118 = sbr.rel (%p115) target = $region28
      $region27: #{tpu_custom_call.1} parent=5 // pred_region
        %s119 = ssub.s32 %s11, 1
        %p120 = pneg %p32
        %p121 = pneg %p29
        %p122 = scmp.lt.s32.totalorder %s16, 1
        %s123 = scalar_select %p122, %s16, 1
        %s124 = smul.addr %s123, 2
        %s125 = scalar_lea.vmem %s1, %s124
        %p126 = pneg %p58
        %p127 = pneg %p55
        %p128 = pneg %p84
        %p129 = pneg %p81
        %s130 = sand.u32 %s71, 1
        %s131 = scalar_lea.sflag [#allocation4], %s130
        %s132 = sand.u32 %s71, 1
        %s133 = smul.addr %s132, 2
        %s134 = scalar_lea.vmem [#allocation3], %s133
        %p135 = scmp.lt.s32.totalorder %s16, 1
        %s136 = scalar_select %p135, %s16, 1
        %s137 = smul.addr %s136, 2
        %s138 = scalar_lea.vmem %s1, %s137
        %v139 = vld [vmem:[%s0] sm:$0xff]
        %v140 = vld [vmem:[%s0 + $0x8] sm:$0xff]
        %v141 = vld [vmem:[%s0 + $0x10] sm:$0xff]
        %v142 = vld [vmem:[%s0 + $0x18] sm:$0xff]
        %v143 = vld [vmem:[%s0 + $0x20] sm:$0xff]
        %v144 = vld [vmem:[%s0 + $0x28] sm:$0xff]
        %v145 = vld [vmem:[%s0 + $0x30] sm:$0xff]
        %v146 = vld [vmem:[%s0 + $0x38] sm:$0xff]
        %v147 = vld [vmem:[%s0 + $0x40] sm:$0xff]
        %v148 = vld [vmem:[%s0 + $0x48] sm:$0xff]
        %v149 = vld [vmem:[%s0 + $0x50] sm:$0xff]
        %v150 = vld [vmem:[%s0 + $0x58] sm:$0xff]
        %v151 = vld [vmem:[%s0 + $0x60] sm:$0xff]
        %v152 = vld [vmem:[%s0 + $0x68] sm:$0xff]
        %v153 = vld [vmem:[%s0 + $0x70] sm:$0xff]
        %v154 = vld [vmem:[%s0 + $0x78] sm:$0xff]
        %v155 = vld [vmem:[%s0 + $0x80] sm:$0xff]
        %v156 = vld [vmem:[%s0 + $0x88] sm:$0xff]
        %v157 = vld [vmem:[%s0 + $0x90] sm:$0xff]
        %v158 = vld [vmem:[%s0 + $0x98] sm:$0xff]
        %v159 = vld [vmem:[%s0 + $0xa0] sm:$0xff]
        %v160 = vld [vmem:[%s0 + $0xa8] sm:$0xff]
        %v161 = vld [vmem:[%s0 + $0xb0] sm:$0xff]
        %v162 = vld [vmem:[%s0 + $0xb8] sm:$0xff]
        %v163 = vld [vmem:[%s0 + $0xc0] sm:$0xff]
        %v164 = vld [vmem:[%s0 + $0xc8] sm:$0xff]
        %v165 = vld [vmem:[%s0 + $0xd0] sm:$0xff]
        %v166 = vld [vmem:[%s0 + $0xd8] sm:$0xff]
        %v167 = vld [vmem:[%s0 + $0xe0] sm:$0xff]
        %v168 = vld [vmem:[%s0 + $0xe8] sm:$0xff]
        %v169 = vld [vmem:[%s0 + $0xf0] sm:$0xff]
        %v170 = vld [vmem:[%s0 + $0xf8] sm:$0xff]
        %v171 = vmul.f32 %v139, 0.00942809
        %v172 = vmul.f32 %v140, 0.00942809
        %v173 = vmul.f32 %v141, 0.00942809
        %v174 = vmul.f32 %v142, 0.00942809
        %v175 = vmul.f32 %v143, 0.00942809
        %v176 = vmul.f32 %v144, 0.00942809
        %v177 = vmul.f32 %v145, 0.00942809
        %v178 = vmul.f32 %v146, 0.00942809
        %v179 = vmul.f32 %v147, 0.00942809
        %v180 = vmul.f32 %v148, 0.00942809
        %v181 = vmul.f32 %v149, 0.00942809
        %v182 = vmul.f32 %v150, 0.00942809
        %v183 = vmul.f32 %v151, 0.00942809
        %v184 = vmul.f32 %v152, 0.00942809
        %v185 = vmul.f32 %v153, 0.00942809
        %v186 = vmul.f32 %v154, 0.00942809
        %v187 = vmul.f32 %v155, 0.00942809
        %v188 = vmul.f32 %v156, 0.00942809
        %v189 = vmul.f32 %v157, 0.00942809
        %v190 = vmul.f32 %v158, 0.00942809
        %v191 = vmul.f32 %v159, 0.00942809
        %v192 = vmul.f32 %v160, 0.00942809
        %v193 = vmul.f32 %v161, 0.00942809
        %v194 = vmul.f32 %v162, 0.00942809
        %v195 = vmul.f32 %v163, 0.00942809
        %v196 = vmul.f32 %v164, 0.00942809
        %v197 = vmul.f32 %v165, 0.00942809
        %v198 = vmul.f32 %v166, 0.00942809
        %v199 = vmul.f32 %v167, 0.00942809
        %v200 = vmul.f32 %v168, 0.00942809
        %v201 = vmul.f32 %v169, 0.00942809
        %v202 = vmul.f32 %v170, 0.00942809
        %v203 = vld [vmem:[%s138] sm:$0x3]
        %v204 = vmul.f32 %v203, 0.00942809
        %v206 = vlaneseq
        %v207 = vshrl.u32 %v206, 7
        %v208 = vsub.s32 0, %v207
        %v209 = vrot.slane %v204, %v208
        %v210 = vlaneseq
        %v211 = vshrl.u32 %v210, 7
        %v212 = vsub.s32 1, %v211
        %v213 = vrot.slane %v204, %v212
        %217 = vset.pattern.permute.xlu0 0
        %218 = vperm.xlu0 %217, %v171
        %v219 = vpop.permute.xlu0 %218
        %222 = vset.pattern.permute.xlu0 0
        %223 = vperm.xlu0 %222, %v172
        %v224 = vpop.permute.xlu0 %223
        %227 = vset.pattern.permute.xlu0 0
        %228 = vperm.xlu0 %227, %v173
        %v229 = vpop.permute.xlu0 %228
        %232 = vset.pattern.permute.xlu0 0
        %233 = vperm.xlu0 %232, %v174
        %v234 = vpop.permute.xlu0 %233
        %237 = vset.pattern.permute.xlu0 0
        %238 = vperm.xlu0 %237, %v175
        %v239 = vpop.permute.xlu0 %238
        %242 = vset.pattern.permute.xlu0 0
        %243 = vperm.xlu0 %242, %v176
        %v244 = vpop.permute.xlu0 %243
        %247 = vset.pattern.permute.xlu0 0
        %248 = vperm.xlu0 %247, %v177
        %v249 = vpop.permute.xlu0 %248
        %252 = vset.pattern.permute.xlu0 0
        %253 = vperm.xlu0 %252, %v178
        %v254 = vpop.permute.xlu0 %253
        %257 = vset.pattern.permute.xlu0 0
        %258 = vperm.xlu0 %257, %v179
        %v259 = vpop.permute.xlu0 %258
        %262 = vset.pattern.permute.xlu0 0
        %263 = vperm.xlu0 %262, %v180
        %v264 = vpop.permute.xlu0 %263
        %267 = vset.pattern.permute.xlu0 0
        %268 = vperm.xlu0 %267, %v181
        %v269 = vpop.permute.xlu0 %268
        %272 = vset.pattern.permute.xlu0 0
        %273 = vperm.xlu0 %272, %v182
        %v274 = vpop.permute.xlu0 %273
        %277 = vset.pattern.permute.xlu0 0
        %278 = vperm.xlu0 %277, %v183
        %v279 = vpop.permute.xlu0 %278
        %282 = vset.pattern.permute.xlu0 0
        %283 = vperm.xlu0 %282, %v184
        %v284 = vpop.permute.xlu0 %283
        %287 = vset.pattern.permute.xlu0 0
        %288 = vperm.xlu0 %287, %v185
        %v289 = vpop.permute.xlu0 %288
        %292 = vset.pattern.permute.xlu0 0
        %293 = vperm.xlu0 %292, %v186
        %v294 = vpop.permute.xlu0 %293
        %297 = vset.pattern.permute.xlu0 0
        %298 = vperm.xlu0 %297, %v187
        %v299 = vpop.permute.xlu0 %298
        %302 = vset.pattern.permute.xlu0 0
        %303 = vperm.xlu0 %302, %v188
        %v304 = vpop.permute.xlu0 %303
        %307 = vset.pattern.permute.xlu0 0
        %308 = vperm.xlu0 %307, %v189
        %v309 = vpop.permute.xlu0 %308
        %312 = vset.pattern.permute.xlu0 0
        %313 = vperm.xlu0 %312, %v190
        %v314 = vpop.permute.xlu0 %313
        %317 = vset.pattern.permute.xlu0 0
        %318 = vperm.xlu0 %317, %v191
        %v319 = vpop.permute.xlu0 %318
        %322 = vset.pattern.permute.xlu0 0
        %323 = vperm.xlu0 %322, %v192
        %v324 = vpop.permute.xlu0 %323
        %327 = vset.pattern.permute.xlu0 0
        %328 = vperm.xlu0 %327, %v193
        %v329 = vpop.permute.xlu0 %328
        %332 = vset.pattern.permute.xlu0 0
        %333 = vperm.xlu0 %332, %v194
        %v334 = vpop.permute.xlu0 %333
        %337 = vset.pattern.permute.xlu0 0
        %338 = vperm.xlu0 %337, %v195
        %v339 = vpop.permute.xlu0 %338
        %342 = vset.pattern.permute.xlu0 0
        %343 = vperm.xlu0 %342, %v196
        %v344 = vpop.permute.xlu0 %343
        %347 = vset.pattern.permute.xlu0 0
        %348 = vperm.xlu0 %347, %v197
        %v349 = vpop.permute.xlu0 %348
        %352 = vset.pattern.permute.xlu0 0
        %353 = vperm.xlu0 %352, %v198
        %v354 = vpop.permute.xlu0 %353
        %357 = vset.pattern.permute.xlu0 0
        %358 = vperm.xlu0 %357, %v199
        %v359 = vpop.permute.xlu0 %358
        %362 = vset.pattern.permute.xlu0 0
        %363 = vperm.xlu0 %362, %v200
        %v364 = vpop.permute.xlu0 %363
        %367 = vset.pattern.permute.xlu0 0
        %368 = vperm.xlu0 %367, %v201
        %v369 = vpop.permute.xlu0 %368
        %372 = vset.pattern.permute.xlu0 0
        %373 = vperm.xlu0 %372, %v202
        %v374 = vpop.permute.xlu0 %373
        %v376 = vsub.f32 %v209, %v219
        %v377 = vsub.f32 %v213, %v219
        %v378 = vsub.f32 %v209, %v224
        %v379 = vsub.f32 %v213, %v224
        %v380 = vsub.f32 %v209, %v229
        %v381 = vsub.f32 %v213, %v229
        %v382 = vsub.f32 %v209, %v234
        %v383 = vsub.f32 %v213, %v234
        %v384 = vsub.f32 %v209, %v239
        %v385 = vsub.f32 %v213, %v239
        %v386 = vsub.f32 %v209, %v244
        %v387 = vsub.f32 %v213, %v244
        %v388 = vsub.f32 %v209, %v249
        %v389 = vsub.f32 %v213, %v249
        %v390 = vsub.f32 %v209, %v254
        %v391 = vsub.f32 %v213, %v254
        %v392 = vsub.f32 %v209, %v259
        %v393 = vsub.f32 %v213, %v259
        %v394 = vsub.f32 %v209, %v264
        %v395 = vsub.f32 %v213, %v264
        %v396 = vsub.f32 %v209, %v269
        %v397 = vsub.f32 %v213, %v269
        %v398 = vsub.f32 %v209, %v274
        %v399 = vsub.f32 %v213, %v274
        %v400 = vsub.f32 %v209, %v279
        %v401 = vsub.f32 %v213, %v279
        %v402 = vsub.f32 %v209, %v284
        %v403 = vsub.f32 %v213, %v284
        %v404 = vsub.f32 %v209, %v289
        %v405 = vsub.f32 %v213, %v289
        %v406 = vsub.f32 %v209, %v294
        %v407 = vsub.f32 %v213, %v294
        %v408 = vsub.f32 %v209, %v299
        %v409 = vsub.f32 %v213, %v299
        %v410 = vsub.f32 %v209, %v304
        %v411 = vsub.f32 %v213, %v304
        %v412 = vsub.f32 %v209, %v309
        %v413 = vsub.f32 %v213, %v309
        %v414 = vsub.f32 %v209, %v314
        %v415 = vsub.f32 %v213, %v314
        %v416 = vsub.f32 %v209, %v319
        %v417 = vsub.f32 %v213, %v319
        %v418 = vsub.f32 %v209, %v324
        %v419 = vsub.f32 %v213, %v324
        %v420 = vsub.f32 %v209, %v329
        %v421 = vsub.f32 %v213, %v329
        %v422 = vsub.f32 %v209, %v334
        %v423 = vsub.f32 %v213, %v334
        %v424 = vsub.f32 %v209, %v339
        %v425 = vsub.f32 %v213, %v339
        %v426 = vsub.f32 %v209, %v344
        %v427 = vsub.f32 %v213, %v344
        %v428 = vsub.f32 %v209, %v349
        %v429 = vsub.f32 %v213, %v349
        %v430 = vsub.f32 %v209, %v354
        %v431 = vsub.f32 %v213, %v354
        %v432 = vsub.f32 %v209, %v359
        %v433 = vsub.f32 %v213, %v359
        %v434 = vsub.f32 %v209, %v364
        %v435 = vsub.f32 %v213, %v364
        %v436 = vsub.f32 %v209, %v369
        %v437 = vsub.f32 %v213, %v369
        %v438 = vsub.f32 %v209, %v374
        %v439 = vsub.f32 %v213, %v374
        %v440 = vmul.f32 %v376, %v376
        %v441 = vmul.f32 %v377, %v377
        %v442 = vmul.f32 %v378, %v378
        %v443 = vmul.f32 %v379, %v379
        %v444 = vmul.f32 %v380, %v380
        %v445 = vmul.f32 %v381, %v381
        %v446 = vmul.f32 %v382, %v382
        %v447 = vmul.f32 %v383, %v383
        %v448 = vmul.f32 %v384, %v384
        %v449 = vmul.f32 %v385, %v385
        %v450 = vmul.f32 %v386, %v386
        %v451 = vmul.f32 %v387, %v387
        %v452 = vmul.f32 %v388, %v388
        %v453 = vmul.f32 %v389, %v389
        %v454 = vmul.f32 %v390, %v390
        %v455 = vmul.f32 %v391, %v391
        %v456 = vmul.f32 %v392, %v392
        %v457 = vmul.f32 %v393, %v393
        %v458 = vmul.f32 %v394, %v394
        %v459 = vmul.f32 %v395, %v395
        %v460 = vmul.f32 %v396, %v396
        %v461 = vmul.f32 %v397, %v397
        %v462 = vmul.f32 %v398, %v398
        %v463 = vmul.f32 %v399, %v399
        %v464 = vmul.f32 %v400, %v400
        %v465 = vmul.f32 %v401, %v401
        %v466 = vmul.f32 %v402, %v402
        %v467 = vmul.f32 %v403, %v403
        %v468 = vmul.f32 %v404, %v404
        %v469 = vmul.f32 %v405, %v405
        %v470 = vmul.f32 %v406, %v406
        %v471 = vmul.f32 %v407, %v407
        %v472 = vmul.f32 %v408, %v408
        %v473 = vmul.f32 %v409, %v409
        %v474 = vmul.f32 %v410, %v410
        %v475 = vmul.f32 %v411, %v411
        %v476 = vmul.f32 %v412, %v412
        %v477 = vmul.f32 %v413, %v413
        %v478 = vmul.f32 %v414, %v414
        %v479 = vmul.f32 %v415, %v415
        %v480 = vmul.f32 %v416, %v416
        %v481 = vmul.f32 %v417, %v417
        %v482 = vmul.f32 %v418, %v418
        %v483 = vmul.f32 %v419, %v419
        %v484 = vmul.f32 %v420, %v420
        %v485 = vmul.f32 %v421, %v421
        %v486 = vmul.f32 %v422, %v422
        %v487 = vmul.f32 %v423, %v423
        %v488 = vmul.f32 %v424, %v424
        %v489 = vmul.f32 %v425, %v425
        %v490 = vmul.f32 %v426, %v426
        %v491 = vmul.f32 %v427, %v427
        %v492 = vmul.f32 %v428, %v428
        %v493 = vmul.f32 %v429, %v429
        %v494 = vmul.f32 %v430, %v430
        %v495 = vmul.f32 %v431, %v431
        %v496 = vmul.f32 %v432, %v432
        %v497 = vmul.f32 %v433, %v433
        %v498 = vmul.f32 %v434, %v434
        %v499 = vmul.f32 %v435, %v435
        %v500 = vmul.f32 %v436, %v436
        %v501 = vmul.f32 %v437, %v437
        %v502 = vmul.f32 %v438, %v438
        %v503 = vmul.f32 %v439, %v439
        %v504 = vsub.f32 0.0, %v440
        %v505 = vsub.f32 0.0, %v441
        %v506 = vsub.f32 0.0, %v442
        %v507 = vsub.f32 0.0, %v443
        %v508 = vsub.f32 0.0, %v444
        %v509 = vsub.f32 0.0, %v445
        %v510 = vsub.f32 0.0, %v446
        %v511 = vsub.f32 0.0, %v447
        %v512 = vsub.f32 0.0, %v448
        %v513 = vsub.f32 0.0, %v449
        %v514 = vsub.f32 0.0, %v450
        %v515 = vsub.f32 0.0, %v451
        %v516 = vsub.f32 0.0, %v452
        %v517 = vsub.f32 0.0, %v453
        %v518 = vsub.f32 0.0, %v454
        %v519 = vsub.f32 0.0, %v455
        %v520 = vsub.f32 0.0, %v456
        %v521 = vsub.f32 0.0, %v457
        %v522 = vsub.f32 0.0, %v458
        %v523 = vsub.f32 0.0, %v459
        %v524 = vsub.f32 0.0, %v460
        %v525 = vsub.f32 0.0, %v461
        %v526 = vsub.f32 0.0, %v462
        %v527 = vsub.f32 0.0, %v463
        %v528 = vsub.f32 0.0, %v464
        %v529 = vsub.f32 0.0, %v465
        %v530 = vsub.f32 0.0, %v466
        %v531 = vsub.f32 0.0, %v467
        %v532 = vsub.f32 0.0, %v468
        %v533 = vsub.f32 0.0, %v469
        %v534 = vsub.f32 0.0, %v470
        %v535 = vsub.f32 0.0, %v471
        %v536 = vsub.f32 0.0, %v472
        %v537 = vsub.f32 0.0, %v473
        %v538 = vsub.f32 0.0, %v474
        %v539 = vsub.f32 0.0, %v475
        %v540 = vsub.f32 0.0, %v476
        %v541 = vsub.f32 0.0, %v477
        %v542 = vsub.f32 0.0, %v478
        %v543 = vsub.f32 0.0, %v479
        %v544 = vsub.f32 0.0, %v480
        %v545 = vsub.f32 0.0, %v481
        %v546 = vsub.f32 0.0, %v482
        %v547 = vsub.f32 0.0, %v483
        %v548 = vsub.f32 0.0, %v484
        %v549 = vsub.f32 0.0, %v485
        %v550 = vsub.f32 0.0, %v486
        %v551 = vsub.f32 0.0, %v487
        %v552 = vsub.f32 0.0, %v488
        %v553 = vsub.f32 0.0, %v489
        %v554 = vsub.f32 0.0, %v490
        %v555 = vsub.f32 0.0, %v491
        %v556 = vsub.f32 0.0, %v492
        %v557 = vsub.f32 0.0, %v493
        %v558 = vsub.f32 0.0, %v494
        %v559 = vsub.f32 0.0, %v495
        %v560 = vsub.f32 0.0, %v496
        %v561 = vsub.f32 0.0, %v497
        %v562 = vsub.f32 0.0, %v498
        %v563 = vsub.f32 0.0, %v499
        %v564 = vsub.f32 0.0, %v500
        %v565 = vsub.f32 0.0, %v501
        %v566 = vsub.f32 0.0, %v502
        %v567 = vsub.f32 0.0, %v503
        %v568 = vmul.f32 %v504, 1.442695
        %v569 = vpow.pop %v568
        %v570 = vmul.f32 %v505, 1.442695
        %v571 = vpow.pop %v570
        %v572 = vmul.f32 %v506, 1.442695
        %v573 = vpow.pop %v572
        %v574 = vmul.f32 %v507, 1.442695
        %v575 = vpow.pop %v574
        %v576 = vmul.f32 %v508, 1.442695
        %v577 = vpow.pop %v576
        %v578 = vmul.f32 %v509, 1.442695
        %v579 = vpow.pop %v578
        %v580 = vmul.f32 %v510, 1.442695
        %v581 = vpow.pop %v580
        %v582 = vmul.f32 %v511, 1.442695
        %v583 = vpow.pop %v582
        %v584 = vmul.f32 %v512, 1.442695
        %v585 = vpow.pop %v584
        %v586 = vmul.f32 %v513, 1.442695
        %v587 = vpow.pop %v586
        %v588 = vmul.f32 %v514, 1.442695
        %v589 = vpow.pop %v588
        %v590 = vmul.f32 %v515, 1.442695
        %v591 = vpow.pop %v590
        %v592 = vmul.f32 %v516, 1.442695
        %v593 = vpow.pop %v592
        %v594 = vmul.f32 %v517, 1.442695
        %v595 = vpow.pop %v594
        %v596 = vmul.f32 %v518, 1.442695
        %v597 = vpow.pop %v596
        %v598 = vmul.f32 %v519, 1.442695
        %v599 = vpow.pop %v598
        %v600 = vmul.f32 %v520, 1.442695
        %v601 = vpow.pop %v600
        %v602 = vmul.f32 %v521, 1.442695
        %v603 = vpow.pop %v602
        %v604 = vmul.f32 %v522, 1.442695
        %v605 = vpow.pop %v604
        %v606 = vmul.f32 %v523, 1.442695
        %v607 = vpow.pop %v606
        %v608 = vmul.f32 %v524, 1.442695
        %v609 = vpow.pop %v608
        %v610 = vmul.f32 %v525, 1.442695
        %v611 = vpow.pop %v610
        %v612 = vmul.f32 %v526, 1.442695
        %v613 = vpow.pop %v612
        %v614 = vmul.f32 %v527, 1.442695
        %v615 = vpow.pop %v614
        %v616 = vmul.f32 %v528, 1.442695
        %v617 = vpow.pop %v616
        %v618 = vmul.f32 %v529, 1.442695
        %v619 = vpow.pop %v618
        %v620 = vmul.f32 %v530, 1.442695
        %v621 = vpow.pop %v620
        %v622 = vmul.f32 %v531, 1.442695
        %v623 = vpow.pop %v622
        %v624 = vmul.f32 %v532, 1.442695
        %v625 = vpow.pop %v624
        %v626 = vmul.f32 %v533, 1.442695
        %v627 = vpow.pop %v626
        %v628 = vmul.f32 %v534, 1.442695
        %v629 = vpow.pop %v628
        %v630 = vmul.f32 %v535, 1.442695
        %v631 = vpow.pop %v630
        %v632 = vmul.f32 %v536, 1.442695
        %v633 = vpow.pop %v632
        %v634 = vmul.f32 %v537, 1.442695
        %v635 = vpow.pop %v634
        %v636 = vmul.f32 %v538, 1.442695
        %v637 = vpow.pop %v636
        %v638 = vmul.f32 %v539, 1.442695
        %v639 = vpow.pop %v638
        %v640 = vmul.f32 %v540, 1.442695
        %v641 = vpow.pop %v640
        %v642 = vmul.f32 %v541, 1.442695
        %v643 = vpow.pop %v642
        %v644 = vmul.f32 %v542, 1.442695
        %v645 = vpow.pop %v644
        %v646 = vmul.f32 %v543, 1.442695
        %v647 = vpow.pop %v646
        %v648 = vmul.f32 %v544, 1.442695
        %v649 = vpow.pop %v648
        %v650 = vmul.f32 %v545, 1.442695
        %v651 = vpow.pop %v650
        %v652 = vmul.f32 %v546, 1.442695
        %v653 = vpow.pop %v652
        %v654 = vmul.f32 %v547, 1.442695
        %v655 = vpow.pop %v654
        %v656 = vmul.f32 %v548, 1.442695
        %v657 = vpow.pop %v656
        %v658 = vmul.f32 %v549, 1.442695
        %v659 = vpow.pop %v658
        %v660 = vmul.f32 %v550, 1.442695
        %v661 = vpow.pop %v660
        %v662 = vmul.f32 %v551, 1.442695
        %v663 = vpow.pop %v662
        %v664 = vmul.f32 %v552, 1.442695
        %v665 = vpow.pop %v664
        %v666 = vmul.f32 %v553, 1.442695
        %v667 = vpow.pop %v666
        %v668 = vmul.f32 %v554, 1.442695
        %v669 = vpow.pop %v668
        %v670 = vmul.f32 %v555, 1.442695
        %v671 = vpow.pop %v670
        %v672 = vmul.f32 %v556, 1.442695
        %v673 = vpow.pop %v672
        %v674 = vmul.f32 %v557, 1.442695
        %v675 = vpow.pop %v674
        %v676 = vmul.f32 %v558, 1.442695
        %v677 = vpow.pop %v676
        %v678 = vmul.f32 %v559, 1.442695
        %v679 = vpow.pop %v678
        %v680 = vmul.f32 %v560, 1.442695
        %v681 = vpow.pop %v680
        %v682 = vmul.f32 %v561, 1.442695
        %v683 = vpow.pop %v682
        %v684 = vmul.f32 %v562, 1.442695
        %v685 = vpow.pop %v684
        %v686 = vmul.f32 %v563, 1.442695
        %v687 = vpow.pop %v686
        %v688 = vmul.f32 %v564, 1.442695
        %v689 = vpow.pop %v688
        %v690 = vmul.f32 %v565, 1.442695
        %v691 = vpow.pop %v690
        %v692 = vmul.f32 %v566, 1.442695
        %v693 = vpow.pop %v692
        %v694 = vmul.f32 %v567, 1.442695
        %v695 = vpow.pop %v694
        %v696 = vadd.f32 %v569, %v573
        %v697 = vadd.f32 %v696, %v577
        %v698 = vadd.f32 %v697, %v581
        %v699 = vadd.f32 %v698, %v585
        %v700 = vadd.f32 %v699, %v589
        %v701 = vadd.f32 %v700, %v593
        %v702 = vadd.f32 %v701, %v597
        %v703 = vadd.f32 %v702, %v601
        %v704 = vadd.f32 %v703, %v605
        %v705 = vadd.f32 %v704, %v609
        %v706 = vadd.f32 %v705, %v613
        %v707 = vadd.f32 %v706, %v617
        %v708 = vadd.f32 %v707, %v621
        %v709 = vadd.f32 %v708, %v625
        %v710 = vadd.f32 %v709, %v629
        %v711 = vadd.f32 %v710, %v633
        %v712 = vadd.f32 %v711, %v637
        %v713 = vadd.f32 %v712, %v641
        %v714 = vadd.f32 %v713, %v645
        %v715 = vadd.f32 %v714, %v649
        %v716 = vadd.f32 %v715, %v653
        %v717 = vadd.f32 %v716, %v657
        %v718 = vadd.f32 %v717, %v661
        %v719 = vadd.f32 %v718, %v665
        %v720 = vadd.f32 %v719, %v669
        %v721 = vadd.f32 %v720, %v673
        %v722 = vadd.f32 %v721, %v677
        %v723 = vadd.f32 %v722, %v681
        %v724 = vadd.f32 %v723, %v685
        %v725 = vadd.f32 %v724, %v689
        %v726 = vadd.f32 %v725, %v693
        %v727 = vrot.slane %v726, 4
        %v728 = vadd.f32 %v726, %v727
        %v729 = vrot.slane %v728, 2
        %v730 = vadd.f32 %v728, %v729
        %v731 = vrot.slane %v730, 1
        %v732 = vadd.f32 %v730, %v731
        %v733 = vadd.f32 %v571, %v575
        %v734 = vadd.f32 %v733, %v579
        %v735 = vadd.f32 %v734, %v583
        %v736 = vadd.f32 %v735, %v587
        %v737 = vadd.f32 %v736, %v591
        %v738 = vadd.f32 %v737, %v595
        %v739 = vadd.f32 %v738, %v599
        %v740 = vadd.f32 %v739, %v603
        %v741 = vadd.f32 %v740, %v607
        %v742 = vadd.f32 %v741, %v611
        %v743 = vadd.f32 %v742, %v615
        %v744 = vadd.f32 %v743, %v619
        %v745 = vadd.f32 %v744, %v623
        %v746 = vadd.f32 %v745, %v627
        %v747 = vadd.f32 %v746, %v631
        %v748 = vadd.f32 %v747, %v635
        %v749 = vadd.f32 %v748, %v639
        %v750 = vadd.f32 %v749, %v643
        %v751 = vadd.f32 %v750, %v647
        %v752 = vadd.f32 %v751, %v651
        %v753 = vadd.f32 %v752, %v655
        %v754 = vadd.f32 %v753, %v659
        %v755 = vadd.f32 %v754, %v663
        %v756 = vadd.f32 %v755, %v667
        %v757 = vadd.f32 %v756, %v671
        %v758 = vadd.f32 %v757, %v675
        %v759 = vadd.f32 %v758, %v679
        %v760 = vadd.f32 %v759, %v683
        %v761 = vadd.f32 %v760, %v687
        %v762 = vadd.f32 %v761, %v691
        %v763 = vadd.f32 %v762, %v695
        %v764 = vrot.slane %v763, 4
        %v765 = vadd.f32 %v763, %v764
        %v766 = vrot.slane %v765, 2
        %v767 = vadd.f32 %v765, %v766
        %v768 = vrot.slane %v767, 1
        %v769 = vadd.f32 %v767, %v768
        %v772 = vcombine.low %v732, %v769
        %v774 = vunpack.c.l.s4 1966171168
        %v775 = vunpack.c.0.s8 %v774
        %v776 = vlaneseq
        %v777 = vshrl.u32 %v776, 7
        %v778 = vsub.s32 %v775, %v777
        %v779 = vrot.slane %v772, %v778
        %v781 = vunpack.c.l.s4 1966171168
        %v782 = vunpack.c.0.s8 %v781
        %v783 = vlaneseq
        %v784 = vshrl.u32 %v783, 7
        %v785 = vsub.s32 %v782, %v784
        %v786 = vrot.slane %v779, %v785
        %v788 = vlaneseq
        %vm789 = vcmp.ge.s32.totalorder %v788, 0
        %vm790 = vcmp.lt.s32.totalorder %v788, 256
        %vm791 = vmand %vm789, %vm790
        %792 = vst.msk [vmem:[#allocation2] sm:$0x3] %vm791, %v786
        %v793 = vadd.f32 %v732, %v769
        %794 = vadd.xlane.f32.xlu0 %v793
        %v795 = vpop.xlane.xlu0 %794
        %v796 = vadd.f32 %v795, 0.0
        %v797 = vrcp.pop %v796
        %v798 = vmul.f32 1.0, %v797
        %v799 = vld [vmem:[#allocation2] sm:$0x3]
        %v800 = vmul.f32 %v799, %v798
        %801 = vst.msk [vmem:[%s134] sm:$0x3] %vm791, %v800
        %s802 = sand.u32 %s71, 1
        %s803 = scalar_lea.sflag [#allocation4], %s802
        %s804 = sand.u32 %s71, 1
        %s805 = smul.addr %s804, 2
        %s806 = scalar_lea.vmem [#allocation3], %s805
        // Predicated region
        $region29: #{tpu_custom_call.1} parent=27 // pred_check
          %p807 = pneg %p81
        $region30: #{tpu_custom_call.1} parent=27 // pred_check_branch
          %809 = sbr.rel (%p807) target = $region32
        $region31: #{tpu_custom_call.1} parent=27 // pred_region
          %s811 = ssub.s32 32, 32
          %812 = vsyncadd %s803, %s811
          %s813 = smul.addr %s16, 2
          %s814 = smul.addr %s813, 16
          %s815 = scalar_lea.hbm %s2, %s814
          %s817 = sshll.u32 %s806, 4
          %s818 = int_to_ptr.vmem [resolvable:$true] %s817
          %820 = dma.vmem_to_hbm [thread:$0]  %s818, 32, %s815, %s803
        $region32: #{tpu_custom_call.1} parent=27 // pred_fallthru
          _
      $region28: #{tpu_custom_call.1} parent=5 // pred_fallthru
        _
      %p821 = scmp.le.s32.totalorder 2, %s11
      // Predicated region
      $region33: #{tpu_custom_call.1} parent=5 // pred_check
        %p822 = pneg %p821
      $region34: #{tpu_custom_call.1} parent=5 // pred_check_branch
        %824 = sbr.rel (%p822) target = $region36
      $region35: #{tpu_custom_call.1} parent=5 // pred_region
        %s825 = ssub.s32 %s11, 2
        // Predicated region
        $region37: #{tpu_custom_call.1} parent=35 // pred_check
          %p826 = pneg %p87
        $region38: #{tpu_custom_call.1} parent=35 // pred_check_branch
          %828 = sbr.rel (%p826) target = $region40
        $region39: #{tpu_custom_call.1} parent=35 // pred_region
          %s829 = sand.u32 %s72, 1
          %s830 = scalar_lea.sflag [#allocation4], %s829
          %s831 = sand.u32 %s72, 1
          %s832 = smul.addr %s831, 2
          %s833 = scalar_lea.vmem [#allocation3], %s832
          %834 = dma.done %s830, 32
        $region40: #{tpu_custom_call.1} parent=35 // pred_fallthru
          _
      $region36: #{tpu_custom_call.1} parent=5 // pred_fallthru
        _
    $region6: #{tpu_custom_call.1} parent=1 // loop_footer
      %s15 = sadd.s32 1, %s11
    $region7: #{tpu_custom_call.1} parent=1 // loop_footer_branch
      %10 = sbr.rel target = $region3
    $region8: #{tpu_custom_call.1} parent=1 // loop_exit
      _
    %835 = vsyncpa [#allocation4], 1
    %s836 = scalar_lea.sflag [#allocation4], 1
    %837 = vsyncpa %s836, 1

</llo_original>
